<compile_context>
chip_gen: v7x
topology: tpu7x:2x2x1
jax: 0.10.0
libtpu: 0.0.40
codegen_flags: <defaults>
</compile_context>

<pallas_src>
import numpy as np
import jax
import jax.numpy as jnp
from jax.experimental import pallas as pl
from jax.experimental.pallas import tpu as pltpu


def _pick_lane_block():
    # v5e and older have 128x128 MXU tiles; a 256-wide triangular matmul there splits
    # into extra passes, so use L=128.  v6e / v7x (256x256 MXU) use L=256.
    try:
        kind = jax.devices()[0].device_kind.lower()
    except Exception:
        return 256
    for tag in ("v2", "v3", "v4", "v5"):
        if tag in kind:
            return 128
    return 256


_LANE_BLOCK = _pick_lane_block()  # L: cumsum tile width (128 on v5-, 256 on v6e/v7x)
_MAX_BLOCK_ROWS = 128             # BR: sublane rows per reduction step (sweep 64/128/256)
_ELEMWISE_TN = 16384              # lane tile for kernel 1 (multiple of 128)
_SENTINEL = 2 ** 30               # int32 key for ignored/padded points (> every valid key)


def _make_elementwise_kernel(n_cols, tn):
    def kernel(p_ref, lab_ref, key_ref, stat_ref):
        # p_ref: (B, 3, TN) probas block (all channels in VMEM, moving channel read here)
        p_mov = p_ref[:, 2, :]                                  # (B, TN) f32
        lab = lab_ref[...]                                      # (B, TN) i32
        col = jax.lax.broadcasted_iota(jnp.int32, lab.shape, 1)
        in_n = (pl.program_id(0) * tn + col) < n_cols           # mask OOB lanes (last block)
        valid = (lab != 0) & in_n
        gt_b = (lab == 2) & in_n
        gt_f = gt_b.astype(jnp.float32)
        # err in [0,1] for softmax probs -> bitcast(err) < 2^30 -> "<< 1" never overflows.
        err = jnp.abs(gt_f - p_mov)
        err_bits = pltpu.bitcast(err, jnp.int32)                # monotone in err (err >= 0)
        packed = jnp.bitwise_or(jnp.left_shift(err_bits, 1), gt_b.astype(jnp.int32))
        key_ref[...] = jnp.where(valid, -packed, jnp.int32(_SENTINEL))

        # Per-block partial sums (row 0 = positives, row 1 = valid count), lane-replicated.
        gt_sum = jnp.sum(gt_f)
        val_sum = jnp.sum(valid.astype(jnp.float32))
        row = jax.lax.broadcasted_iota(jnp.int32, (1, 2, 128), 1)
        stat_ref[...] = jnp.where(row == 0, gt_sum, val_sum).astype(jnp.float32)

    return kernel


def _newton_recip(x):
    y = pl.reciprocal(x, approx=True)   # EUP slot (cheap)
    return y * (2.0 - x * y)            # one Newton step -> ~f32-level accuracy


def _lovasz_kernel(scal_ref, tri_ref, key_ref, out_ref, cg_carry):
    """One (BR, L) chunk of the globally sorted key sequence."""
    step = pl.program_id(0)

    @pl.when(step == 0)
    def _():
        out_ref[...] = jnp.zeros_like(out_ref)
        cg_carry[...] = jnp.zeros_like(cg_carry)

    scal = scal_ref[...]                 # (1, 2) f32: [gts, n_valid]
    gts = scal[:, 0:1]                   # (1, 1)
    n_valid = scal[:, 1:2]               # (1, 1)

    k = key_ref[...]                     # (BR, L) int32, sorted ascending
    BR, L = k.shape
    valid = k < 1                        # valid keys are <= 0, sentinel is > 0
    valid_f = valid.astype(jnp.float32)
    u = jnp.where(valid, -k, 0)          # non-negative packed payload
    g = jnp.bitwise_and(u, 1).astype(jnp.float32)                  # fg indicator (0/1)
    err = pltpu.bitcast(jnp.right_shift(u, 1), jnp.float32)        # exact sorted errors
    n = valid_f - g                                                # valid-negative indicator

    # Single intra-row inclusive prefix sum on the MXU (0/1 bf16 operands, f32 acc -> exact).
    tri = tri_ref[...]                   # (L, L) bf16, tri[j, l] = (j <= l)
    cg_row = jnp.dot(g.astype(jnp.bfloat16), tri, preferred_element_type=jnp.float32)
    rt_g = cg_row[:, L - 1:L]            # (BR, 1) per-row totals (exact integer counts)

    # Exclusive row-carry within the chunk: tiny (BR,BR)x(BR,1) bf16 matmul (exact: <= L).
    ri = jax.lax.broadcasted_iota(jnp.int32, (BR, BR), 0)
    ci = jax.lax.broadcasted_iota(jnp.int32, (BR, BR), 1)
    s_strict = (ci < ri).astype(jnp.bfloat16)
    rowc = jnp.dot(s_strict, rt_g.astype(jnp.bfloat16), preferred_element_type=jnp.float32)

    cg = cg_row + rowc + cg_carry[...]   # global inclusive cumsum of positives

    # Cumulative valid count from the global position (all valid points precede ignored
    # ones), so the second cumsum matmul is unnecessary.  f32 exact for P < 2^24.
    r_idx = jax.lax.broadcasted_iota(jnp.int32, (BR, L), 0)
    l_idx = jax.lax.broadcasted_iota(jnp.int32, (BR, L), 1)
    pos1 = (step * (BR * L) + r_idx * L + l_idx + 1).astype(jnp.float32)
    cum_valid = jnp.minimum(pos1, n_valid)
    cn = cum_valid - cg                  # global inclusive cumsum of valid negatives

    inter = gts - cg
    union = gts + cn
    inter_ex = inter + g                 # exclusive (prefix at j-1)
    union_ex = union - n

    # union >= 1 at every valid position, so the clamp only sanitizes masked lanes.
    inv_u = _newton_recip(jnp.maximum(union, 1.0))
    inv_ux = _newton_recip(jnp.maximum(union_ex, 1.0))
    ratio = inter * inv_u
    ratio_ex = jnp.where(union_ex > 0.5, inter_ex * inv_ux, 1.0)   # jaccard[-1] := 0
    grad = ratio_ex - ratio              # grad[j] = jaccard[j] - jaccard[j-1]

    contrib = jnp.where(valid, err * grad, 0.0)
    part = jnp.sum(contrib, axis=1, keepdims=True)
    out_ref[...] += jnp.sum(part, axis=0, keepdims=True)

    cg_carry[...] += jnp.sum(rt_g, axis=0, keepdims=True)


@jax.jit
def lovasz_softmax_pointcloud(probas, labels):
    """probas: [B, 3, N] f32, labels: [B, N] int (0 ignore, 1 static, 2 moving) -> scalar."""
    B, C, N = probas.shape
    assert C == 3, "probas must have 3 channels"
    P = B * N
    assert P < 2 ** 24, "f32 prefix-sum / position math is exact only below 2^24 points"

    probas = probas.astype(jnp.float32)
    labels_i32 = labels.astype(jnp.int32)

    # ---- Kernel 1: elementwise remap + packed sort key + partial sums ----------------
    TN = N if N <= _ELEMWISE_TN else _ELEMWISE_TN
    grid_n = pl.cdiv(N, TN)
    keys, stats = pl.pallas_call(
        _make_elementwise_kernel(N, TN),
        grid=(grid_n,),
        in_specs=[
            pl.BlockSpec((B, 3, TN), lambda i: (0, 0, i)),      # all channels, slice in-kernel
            pl.BlockSpec((B, TN), lambda i: (0, i)),
        ],
        out_specs=[
            pl.BlockSpec((B, TN), lambda i: (0, i)),
            pl.BlockSpec((1, 2, 128), lambda i: (i, 0, 0)),
        ],
        out_shape=[jax.ShapeDtypeStruct((B, N), jnp.int32),
                   jax.ShapeDtypeStruct((grid_n, 2, 128), jnp.float32)],
        compiler_params=pltpu.CompilerParams(dimension_semantics=("parallel",)),
    )(probas, labels_i32)

    sums = jnp.sum(stats, axis=0)        # (2, 128); lane 0 carries the real values
    gts = sums[0, 0]                     # total positives among valid points
    n_valid = sums[1, 0]                 # total valid points
    scalars = jnp.stack([gts, n_valid]).reshape(1, 2)

    # ---- Glue: single-operand ascending sort of the packed keys ----------------------
    keys_sorted = jax.lax.sort(keys.reshape(P))

    # ---- Kernel 2: blocked Lovasz reduction over (BR, L) chunks ----------------------
    L = _LANE_BLOCK
    M = pl.cdiv(P, L)
    BR = min(_MAX_BLOCK_ROWS, max(8, ((M + 7) // 8) * 8))
    M_pad = ((M + BR - 1) // BR) * BR
    P_pad = M_pad * L
    keys_tiles = jnp.pad(keys_sorted, (0, P_pad - P),
                         constant_values=_SENTINEL).reshape(M_pad, L)

    # L x L inclusive upper-triangular cumsum matrix (0/1 -> exact in bf16, f32 acc).
    l_idx = jnp.arange(L, dtype=jnp.int32)
    tri = (l_idx[:, None] <= l_idx[None, :]).astype(jnp.bfloat16)

    # VMEM budget (worst case, v7x 32 MiB scoped): tri 128KB + keys 2x(BR*L*4)=256KB
    # + (1,2)/(1,1) blocks + staged intermediates (~1 MiB)  ->  far under the limit.
    loss = pl.pallas_call(
        _lovasz_kernel,
        grid=(M_pad // BR,),
        in_specs=[
            pl.BlockSpec((1, 2), lambda i: (0, 0)),             # [gts, n_valid] (resident)
            pl.BlockSpec((L, L), lambda i: (0, 0)),             # triangular tile (resident)
            pl.BlockSpec((BR, L), lambda i: (i, 0)),            # sorted key chunk
        ],
        out_specs=pl.BlockSpec((1, 1), lambda i: (0, 0)),
        out_shape=jax.ShapeDtypeStruct((1, 1), jnp.float32),
        scratch_shapes=[pltpu.VMEM((1, 1), jnp.float32)],       # running positives carry
        compiler_params=pltpu.CompilerParams(dimension_semantics=("arbitrary",)),
    )(scalars, tri, keys_tiles)
    return loss[0, 0]


def _reference_loss(probas, labels):
    """Pure numpy port of the PyTorch module (float64)."""
    probas = np.asarray(probas, dtype=np.float64)
    labels = np.asarray(labels)
    B, C, N = probas.shape
    pb = np.transpose(probas[:, 1:, :], (0, 2, 1)).reshape(-1, 2)
    lab = labels.reshape(-1).astype(np.int64)
    lab_bin = np.where(lab == 0, -1, np.where(lab == 1, 0, 1))
    valid = lab_bin != -1
    if valid.sum() == 0:
        return 0.0
    pv = pb[valid]
    lv = lab_bin[valid].astype(np.float64)
    errors = np.abs(lv - pv[:, 1])
    perm = np.argsort(-errors, kind="stable")
    errors_sorted = errors[perm]
    fg = lv[perm]
    gts = fg.sum()
    inter = gts - np.cumsum(fg)
    union = gts + np.cumsum(1.0 - fg)
    jac = 1.0 - inter / union
    if len(fg) > 1:
        jac[1:] = jac[1:] - jac[:-1]
    return float(np.dot(errors_sorted, jac))


if __name__ == "__main__":
    B, C, N = 2, 3, 128
    k0 = jax.random.PRNGKey(0)
    kp, kl = jax.random.split(k0)
    logits = jax.random.normal(kp, (B, C, N), dtype=jnp.float32)
    probas = jax.nn.softmax(logits, axis=1)                         # [B, 3, N]
    labels = jax.random.randint(kl, (B, N), 0, 3, dtype=jnp.int32)  # values in {0, 1, 2}

    loss = lovasz_softmax_pointcloud(probas, labels)
    loss = jax.block_until_ready(loss)

    ref = _reference_loss(np.asarray(probas), np.asarray(labels))
    np.testing.assert_allclose(float(loss), ref, rtol=1e-4, atol=1e-4)
    print("KERNEL_OK")
</pallas_src>

<mosaic_0001>
module attributes {stable_mosaic.version = 11 : i64} {
  func.func @kernel(%arg0: i32, %arg1: memref<2x3x128xf32, #tpu.memory_space<vmem>>, %arg2: memref<2x128xi32, #tpu.memory_space<vmem>>, %arg3: memref<2x128xi32, #tpu.memory_space<vmem>>, %arg4: memref<1x2x128xf32, #tpu.memory_space<vmem>>) attributes {dimension_semantics = [#tpu.dimension_semantics<parallel>], iteration_bounds = array<i64: 1>, scalar_prefetch = 0 : i64, scratch_operands = 0 : i64, tpu.core_type = #tpu.core_type<tc>, window_params = [{transform_indices = @transform_0, window_bounds = array<i64: 2, 3, 128>}, {transform_indices = @transform_1, window_bounds = array<i64: 2, 128>}, {transform_indices = @transform_2, window_bounds = array<i64: 2, 128>}, {transform_indices = @transform_3, window_bounds = array<i64: 1, 2, 128>}]} {
    %c0 = arith.constant 0 : index
    %c2 = arith.constant 2 : index
    %c0_0 = arith.constant 0 : index
    %0 = vector.load %arg1[%c0, %c2, %c0_0] : memref<2x3x128xf32, #tpu.memory_space<vmem>>, vector<2x1x128xf32>
    %1 = vector.shape_cast %0 : vector<2x1x128xf32> to vector<2x128xf32>
    %c0_1 = arith.constant 0 : index
    %c0_2 = arith.constant 0 : index
    %2 = vector.load %arg2[%c0_1, %c0_2] : memref<2x128xi32, #tpu.memory_space<vmem>>, vector<2x128xi32>
    %3 = tpu.iota {dimensions = array<i32: 1>} : vector<2x128xi32>
    %c128_i32 = arith.constant 128 : i32
    %4 = arith.muli %arg0, %c128_i32 : i32
    %5 = vector.broadcast %4 : i32 to vector<2x128xi32>
    %6 = arith.addi %5, %3 : vector<2x128xi32>
    %c128_i32_3 = arith.constant 128 : i32
    %7 = vector.broadcast %c128_i32_3 : i32 to vector<2x128xi32>
    %8 = arith.cmpi slt, %6, %7 : vector<2x128xi32>
    %c0_i32 = arith.constant 0 : i32
    %9 = vector.broadcast %c0_i32 : i32 to vector<2x128xi32>
    %10 = arith.cmpi ne, %2, %9 : vector<2x128xi32>
    %11 = arith.andi %10, %8 : vector<2x128xi1>
    %c2_i32 = arith.constant 2 : i32
    %12 = vector.broadcast %c2_i32 : i32 to vector<2x128xi32>
    %13 = arith.cmpi eq, %2, %12 : vector<2x128xi32>
    %14 = arith.andi %13, %8 : vector<2x128xi1>
    %15 = arith.extui %14 : vector<2x128xi1> to vector<2x128xi32>
    %16 = arith.sitofp %15 : vector<2x128xi32> to vector<2x128xf32>
    %17 = arith.subf %16, %1 : vector<2x128xf32>
    %18 = math.absf %17 : vector<2x128xf32>
    %19 = tpu.bitcast %18 : vector<2x128xf32> -> vector<2x128xi32>
    %c1_i32 = arith.constant 1 : i32
    %20 = vector.broadcast %c1_i32 : i32 to vector<2x128xi32>
    %21 = arith.shli %19, %20 : vector<2x128xi32>
    %22 = arith.extui %14 : vector<2x128xi1> to vector<2x128xi32>
    %23 = arith.ori %21, %22 : vector<2x128xi32>
    %c0_i32_4 = arith.constant 0 : i32
    %24 = vector.broadcast %c0_i32_4 : i32 to vector<2x128xi32>
    %25 = arith.subi %24, %23 : vector<2x128xi32>
    %c1073741824_i32 = arith.constant 1073741824 : i32
    %26 = vector.broadcast %c1073741824_i32 : i32 to vector<2x128xi32>
    %27 = arith.select %11, %25, %26 : vector<2x128xi1>, vector<2x128xi32>
    %c0_5 = arith.constant 0 : index
    %c0_6 = arith.constant 0 : index
    %28 = vector.load %arg3[%c0_5, %c0_6] : memref<2x128xi32, #tpu.memory_space<vmem>>, vector<2x128xi32>
    tpu.vector_store %arg3[%c0_5, %c0_6], %27 {strides = array<i32>} : memref<2x128xi32, #tpu.memory_space<vmem>>, vector<2x128xi32>,
    %29 = vector.shape_cast %16 : vector<2x128xf32> to vector<1x2x128xf32>
    %cst = arith.constant dense<0.000000e+00> : vector<1xf32>
    %30 = vector.multi_reduction <add>, %29, %cst [1, 2] : vector<1x2x128xf32> to vector<1xf32>
    %31 = vector.shape_cast %30 : vector<1xf32> to vector<1x1x1xf32>
    %32 = vector.extract %31[0, 0, 0] : f32 from vector<1x1x1xf32>
    %33 = arith.extui %11 : vector<2x128xi1> to vector<2x128xi32>
    %34 = arith.sitofp %33 : vector<2x128xi32> to vector<2x128xf32>
    %35 = vector.shape_cast %34 : vector<2x128xf32> to vector<1x2x128xf32>
    %cst_7 = arith.constant dense<0.000000e+00> : vector<1xf32>
    %36 = vector.multi_reduction <add>, %35, %cst_7 [1, 2] : vector<1x2x128xf32> to vector<1xf32>
    %37 = vector.shape_cast %36 : vector<1xf32> to vector<1x1x1xf32>
    %38 = vector.extract %37[0, 0, 0] : f32 from vector<1x1x1xf32>
    %39 = tpu.iota {dimensions = array<i32: 1>} : vector<1x2x128xi32>
    %c0_i32_8 = arith.constant 0 : i32
    %40 = vector.broadcast %c0_i32_8 : i32 to vector<1x2x128xi32>
    %41 = arith.cmpi eq, %39, %40 : vector<1x2x128xi32>
    %42 = vector.broadcast %32 : f32 to vector<1x2x128xf32>
    %43 = vector.broadcast %38 : f32 to vector<1x2x128xf32>
    %44 = arith.select %41, %42, %43 : vector<1x2x128xi1>, vector<1x2x128xf32>
    %c0_9 = arith.constant 0 : index
    %c0_10 = arith.constant 0 : index
    %c0_11 = arith.constant 0 : index
    %45 = vector.load %arg4[%c0_9, %c0_10, %c0_11] : memref<1x2x128xf32, #tpu.memory_space<vmem>>, vector<1x2x128xf32>
    tpu.vector_store %arg4[%c0_9, %c0_10, %c0_11], %44 {strides = array<i32>} : memref<1x2x128xf32, #tpu.memory_space<vmem>>, vector<1x2x128xf32>,
    return
  }
  func.func @transform_0(%arg0: i32) -> (i32, i32, i32) {
    %c0_i32 = arith.constant 0 : i32
    %c0_i32_0 = arith.constant 0 : i32
    %c0_i32_1 = arith.constant 0 : i32
    return %c0_i32, %c0_i32_0, %arg0 : i32, i32, i32
  }
  func.func @transform_1(%arg0: i32) -> (i32, i32) {
    %c0_i32 = arith.constant 0 : i32
    %c0_i32_0 = arith.constant 0 : i32
    return %c0_i32, %arg0 : i32, i32
  }
  func.func @transform_2(%arg0: i32) -> (i32, i32) {
    %c0_i32 = arith.constant 0 : i32
    %c0_i32_0 = arith.constant 0 : i32
    return %c0_i32, %arg0 : i32, i32
  }
  func.func @transform_3(%arg0: i32) -> (i32, i32, i32) {
    %c0_i32 = arith.constant 0 : i32
    %c0_i32_0 = arith.constant 0 : i32
    %c0_i32_1 = arith.constant 0 : i32
    return %arg0, %c0_i32, %c0_i32_0 : i32, i32, i32
  }
}

module attributes {stable_mosaic.version = 11 : i64} {
  func.func @_lovasz_kernel(%arg0: i32, %arg1: memref<1x2xf32, #tpu.memory_space<vmem>>, %arg2: memref<256x256xbf16, #tpu.memory_space<vmem>>, %arg3: memref<8x256xi32, #tpu.memory_space<vmem>>, %arg4: memref<1x1xf32, #tpu.memory_space<vmem>>, %arg5: memref<1x1xf32, #tpu.memory_space<vmem>>) attributes {dimension_semantics = [#tpu.dimension_semantics<arbitrary>], iteration_bounds = array<i64: 1>, scalar_prefetch = 0 : i64, scratch_operands = 1 : i64, tpu.core_type = #tpu.core_type<tc>, window_params = [{pipeline_mode = #tpu.pipeline_mode<synchronous>, transform_indices = @transform_0, window_bounds = array<i64: 1, 2>}, {pipeline_mode = #tpu.pipeline_mode<synchronous>, transform_indices = @transform_1, window_bounds = array<i64: 256, 256>}, {transform_indices = @transform_2, window_bounds = array<i64: 8, 256>}, {pipeline_mode = #tpu.pipeline_mode<synchronous>, transform_indices = @transform_3, window_bounds = array<i64: 1, 1>}]} {
    %c0_i32 = arith.constant 0 : i32
    %0 = arith.cmpi eq, %arg0, %c0_i32 : i32
    %1 = arith.extui %0 : i1 to i32
    %c0_i32_0 = arith.constant 0 : i32
    %2 = arith.cmpi ne, %1, %c0_i32_0 : i32
    scf.if %2 {
      %cst_32 = arith.constant 0.000000e+00 : f32
      %95 = vector.broadcast %cst_32 : f32 to vector<1x1xf32>
      %c0_33 = arith.constant 0 : index
      %c0_34 = arith.constant 0 : index
      %96 = vector.load %arg4[%c0_33, %c0_34] : memref<1x1xf32, #tpu.memory_space<vmem>>, vector<1x1xf32>
      tpu.vector_store %arg4[%c0_33, %c0_34], %95 {strides = array<i32>} : memref<1x1xf32, #tpu.memory_space<vmem>>, vector<1x1xf32>,
      %cst_35 = arith.constant 0.000000e+00 : f32
      %97 = vector.broadcast %cst_35 : f32 to vector<1x1xf32>
      %c0_36 = arith.constant 0 : index
      %c0_37 = arith.constant 0 : index
      %98 = vector.load %arg5[%c0_36, %c0_37] : memref<1x1xf32, #tpu.memory_space<vmem>>, vector<1x1xf32>
      tpu.vector_store %arg5[%c0_36, %c0_37], %97 {strides = array<i32>} : memref<1x1xf32, #tpu.memory_space<vmem>>, vector<1x1xf32>,
    } else {
    }
    %c0 = arith.constant 0 : index
    %c0_1 = arith.constant 0 : index
    %3 = vector.load %arg1[%c0, %c0_1] : memref<1x2xf32, #tpu.memory_space<vmem>>, vector<1x2xf32>
    %4 = vector.extract_strided_slice %3 {offsets = [0, 0], sizes = [1, 1], strides = [1, 1]} : vector<1x2xf32> to vector<1x1xf32>
    %5 = vector.extract_strided_slice %3 {offsets = [0, 1], sizes = [1, 1], strides = [1, 1]} : vector<1x2xf32> to vector<1x1xf32>
    %c0_2 = arith.constant 0 : index
    %c0_3 = arith.constant 0 : index
    %6 = vector.load %arg3[%c0_2, %c0_3] : memref<8x256xi32, #tpu.memory_space<vmem>>, vector<8x256xi32>
    %c1_i32 = arith.constant 1 : i32
    %7 = vector.broadcast %c1_i32 : i32 to vector<8x256xi32>
    %8 = arith.cmpi slt, %6, %7 : vector<8x256xi32>
    %9 = arith.extui %8 : vector<8x256xi1> to vector<8x256xi32>
    %10 = arith.sitofp %9 : vector<8x256xi32> to vector<8x256xf32>
    %c0_i32_4 = arith.constant 0 : i32
    %11 = vector.broadcast %c0_i32_4 : i32 to vector<8x256xi32>
    %12 = arith.subi %11, %6 : vector<8x256xi32>
    %c0_i32_5 = arith.constant 0 : i32
    %13 = vector.broadcast %c0_i32_5 : i32 to vector<8x256xi32>
    %14 = arith.select %8, %12, %13 : vector<8x256xi1>, vector<8x256xi32>
    %c1_i32_6 = arith.constant 1 : i32
    %15 = vector.broadcast %c1_i32_6 : i32 to vector<8x256xi32>
    %16 = arith.andi %14, %15 : vector<8x256xi32>
    %17 = arith.sitofp %16 : vector<8x256xi32> to vector<8x256xf32>
    %c1_i32_7 = arith.constant 1 : i32
    %18 = vector.broadcast %c1_i32_7 : i32 to vector<8x256xi32>
    %19 = arith.shrsi %14, %18 : vector<8x256xi32>
    %20 = tpu.bitcast %19 : vector<8x256xi32> -> vector<8x256xf32>
    %21 = arith.subf %10, %17 : vector<8x256xf32>
    %c0_8 = arith.constant 0 : index
    %c0_9 = arith.constant 0 : index
    %22 = vector.load %arg2[%c0_8, %c0_9] : memref<256x256xbf16, #tpu.memory_space<vmem>>, vector<256x256xbf16>
    %23 = arith.truncf %17 : vector<8x256xf32> to vector<8x256xbf16>
    %cst = arith.constant dense<0.000000e+00> : vector<8x256xf32>
    %24 = tpu.matmul %23, %22, %cst {dimension_numbers = #tpu.dot_dimension_numbers<[1], [0], [0], [1], [0, 0, 1, 1], [], []>} : vector<8x256xbf16>, vector<256x256xbf16>, vector<8x256xf32> -> vector<8x256xf32>
    %25 = vector.extract_strided_slice %24 {offsets = [0, 255], sizes = [8, 1], strides = [1, 1]} : vector<8x256xf32> to vector<8x1xf32>
    %26 = tpu.iota {dimensions = array<i32: 0>} : vector<8x8xi32>
    %27 = tpu.iota {dimensions = array<i32: 1>} : vector<8x8xi32>
    %28 = arith.cmpi slt, %27, %26 : vector<8x8xi32>
    %29 = arith.extui %28 : vector<8x8xi1> to vector<8x8xi32>
    %30 = arith.sitofp %29 : vector<8x8xi32> to vector<8x8xf32>
    %31 = arith.truncf %30 : vector<8x8xf32> to vector<8x8xbf16>
    %32 = arith.truncf %25 : vector<8x1xf32> to vector<8x1xbf16>
    %cst_10 = arith.constant dense<0.000000e+00> : vector<8x1xf32>
    %33 = tpu.matmul %31, %32, %cst_10 {dimension_numbers = #tpu.dot_dimension_numbers<[1], [0], [0], [1], [0, 0, 1, 1], [], []>} : vector<8x8xbf16>, vector<8x1xbf16>, vector<8x1xf32> -> vector<8x1xf32>
    %34 = vector.broadcast %33 : vector<8x1xf32> to vector<8x256xf32>
    %35 = arith.addf %24, %34 : vector<8x256xf32>
    %c0_11 = arith.constant 0 : index
    %c0_12 = arith.constant 0 : index
    %36 = vector.load %arg5[%c0_11, %c0_12] : memref<1x1xf32, #tpu.memory_space<vmem>>, vector<1x1xf32>
    %37 = vector.broadcast %36 : vector<1x1xf32> to vector<8x256xf32>
    %38 = arith.addf %35, %37 : vector<8x256xf32>
    %39 = tpu.iota {dimensions = array<i32: 0>} : vector<8x256xi32>
    %40 = tpu.iota {dimensions = array<i32: 1>} : vector<8x256xi32>
    %c2048_i32 = arith.constant 2048 : i32
    %41 = arith.muli %arg0, %c2048_i32 : i32
    %c256_i32 = arith.constant 256 : i32
    %42 = vector.broadcast %c256_i32 : i32 to vector<8x256xi32>
    %43 = arith.muli %39, %42 : vector<8x256xi32>
    %44 = vector.broadcast %41 : i32 to vector<8x256xi32>
    %45 = arith.addi %44, %43 : vector<8x256xi32>
    %46 = arith.addi %45, %40 : vector<8x256xi32>
    %c1_i32_13 = arith.constant 1 : i32
    %47 = vector.broadcast %c1_i32_13 : i32 to vector<8x256xi32>
    %48 = arith.addi %46, %47 : vector<8x256xi32>
    %49 = arith.sitofp %48 : vector<8x256xi32> to vector<8x256xf32>
    %50 = vector.broadcast %5 : vector<1x1xf32> to vector<8x256xf32>
    %51 = arith.minimumf %49, %50 : vector<8x256xf32>
    %52 = arith.subf %51, %38 : vector<8x256xf32>
    %53 = vector.broadcast %4 : vector<1x1xf32> to vector<8x256xf32>
    %54 = arith.subf %53, %38 : vector<8x256xf32>
    %55 = vector.broadcast %4 : vector<1x1xf32> to vector<8x256xf32>
    %56 = arith.addf %55, %52 : vector<8x256xf32>
    %57 = arith.addf %54, %17 : vector<8x256xf32>
    %58 = arith.subf %56, %21 : vector<8x256xf32>
    %cst_14 = arith.constant 1.000000e+00 : f32
    %59 = vector.broadcast %cst_14 : f32 to vector<8x256xf32>
    %60 = arith.maximumf %56, %59 : vector<8x256xf32>
    %61 = tpu.reciprocal %60 {approx = true} : vector<8x256xf32> -> vector<8x256xf32>
    %62 = arith.mulf %60, %61 : vector<8x256xf32>
    %cst_15 = arith.constant 2.000000e+00 : f32
    %63 = vector.broadcast %cst_15 : f32 to vector<8x256xf32>
    %64 = arith.subf %63, %62 : vector<8x256xf32>
    %65 = arith.mulf %61, %64 : vector<8x256xf32>
    %cst_16 = arith.constant 1.000000e+00 : f32
    %66 = vector.broadcast %cst_16 : f32 to vector<8x256xf32>
    %67 = arith.maximumf %58, %66 : vector<8x256xf32>
    %68 = tpu.reciprocal %67 {approx = true} : vector<8x256xf32> -> vector<8x256xf32>
    %69 = arith.mulf %67, %68 : vector<8x256xf32>
    %cst_17 = arith.constant 2.000000e+00 : f32
    %70 = vector.broadcast %cst_17 : f32 to vector<8x256xf32>
    %71 = arith.subf %70, %69 : vector<8x256xf32>
    %72 = arith.mulf %68, %71 : vector<8x256xf32>
    %73 = arith.mulf %54, %65 : vector<8x256xf32>
    %cst_18 = arith.constant 5.000000e-01 : f32
    %74 = vector.broadcast %cst_18 : f32 to vector<8x256xf32>
    %75 = arith.cmpf ogt, %58, %74 : vector<8x256xf32>
    %76 = arith.mulf %57, %72 : vector<8x256xf32>
    %cst_19 = arith.constant 1.000000e+00 : f32
    %77 = vector.broadcast %cst_19 : f32 to vector<8x256xf32>
    %78 = arith.select %75, %76, %77 : vector<8x256xi1>, vector<8x256xf32>
    %79 = arith.subf %78, %73 : vector<8x256xf32>
    %80 = arith.mulf %20, %79 : vector<8x256xf32>
    %cst_20 = arith.constant 0.000000e+00 : f32
    %81 = vector.broadcast %cst_20 : f32 to vector<8x256xf32>
    %82 = arith.select %8, %80, %81 : vector<8x256xi1>, vector<8x256xf32>
    %cst_21 = arith.constant dense<0.000000e+00> : vector<8xf32>
    %83 = vector.multi_reduction <add>, %82, %cst_21 [1] : vector<8x256xf32> to vector<8xf32>
    %84 = vector.shape_cast %83 : vector<8xf32> to vector<8x1xf32>
    %c0_22 = arith.constant 0 : index
    %c0_23 = arith.constant 0 : index
    %85 = vector.load %arg4[%c0_22, %c0_23] : memref<1x1xf32, #tpu.memory_space<vmem>>, vector<1x1xf32>
    %cst_24 = arith.constant dense<0.000000e+00> : vector<1xf32>
    %86 = vector.multi_reduction <add>, %84, %cst_24 [0] : vector<8x1xf32> to vector<1xf32>
    %87 = vector.shape_cast %86 : vector<1xf32> to vector<1x1xf32>
    %88 = arith.addf %85, %87 : vector<1x1xf32>
    %c0_25 = arith.constant 0 : index
    %c0_26 = arith.constant 0 : index
    %89 = vector.load %arg4[%c0_25, %c0_26] : memref<1x1xf32, #tpu.memory_space<vmem>>, vector<1x1xf32>
    tpu.vector_store %arg4[%c0_25, %c0_26], %88 {strides = array<i32>} : memref<1x1xf32, #tpu.memory_space<vmem>>, vector<1x1xf32>,
    %c0_27 = arith.constant 0 : index
    %c0_28 = arith.constant 0 : index
    %90 = vector.load %arg5[%c0_27, %c0_28] : memref<1x1xf32, #tpu.memory_space<vmem>>, vector<1x1xf32>
    %cst_29 = arith.constant dense<0.000000e+00> : vector<1xf32>
    %91 = vector.multi_reduction <add>, %25, %cst_29 [0] : vector<8x1xf32> to vector<1xf32>
    %92 = vector.shape_cast %91 : vector<1xf32> to vector<1x1xf32>
    %93 = arith.addf %90, %92 : vector<1x1xf32>
    %c0_30 = arith.constant 0 : index
    %c0_31 = arith.constant 0 : index
    %94 = vector.load %arg5[%c0_30, %c0_31] : memref<1x1xf32, #tpu.memory_space<vmem>>, vector<1x1xf32>
    tpu.vector_store %arg5[%c0_30, %c0_31], %93 {strides = array<i32>} : memref<1x1xf32, #tpu.memory_space<vmem>>, vector<1x1xf32>,
    return
  }
  func.func @transform_0(%arg0: i32) -> (i32, i32) {
    %c0_i32 = arith.constant 0 : i32
    %c0_i32_0 = arith.constant 0 : i32
    %c0_i32_1 = arith.constant 0 : i32
    return %c0_i32, %c0_i32_0 : i32, i32
  }
  func.func @transform_1(%arg0: i32) -> (i32, i32) {
    %c0_i32 = arith.constant 0 : i32
    %c0_i32_0 = arith.constant 0 : i32
    %c0_i32_1 = arith.constant 0 : i32
    return %c0_i32, %c0_i32_0 : i32, i32
  }
  func.func @transform_2(%arg0: i32) -> (i32, i32) {
    %c0_i32 = arith.constant 0 : i32
    %c0_i32_0 = arith.constant 0 : i32
    return %arg0, %c0_i32 : i32, i32
  }
  func.func @transform_3(%arg0: i32) -> (i32, i32) {
    %c0_i32 = arith.constant 0 : i32
    %c0_i32_0 = arith.constant 0 : i32
    %c0_i32_1 = arith.constant 0 : i32
    return %c0_i32, %c0_i32_0 : i32, i32
  }
}

</mosaic_0001>

<llo_original>
// kernel: lovasz_softmax_pointcloud.2
$region0: #{lovasz_softmax_pointcloud.2}
  #allocation0 [shape = 'u32[]', space=smem, size = 0x4, offset = 0x4, fixed_abs, tag = 'smem constant byte address 0x4 - core index']
  #allocation1 [shape = 'u32[144,128]{1,0:T(1,128)}', space=vmem, size = 0x12000, scoped, tag = 'internal scratch']
  %s0 = inlined_call_operand.vmem [shape: f32[2,3,128], index: 0, kind: input, shape index: {}]
  %s1 = inlined_call_operand.vmem [shape: s32[2,128], index: 1, kind: input, shape index: {}]
  %s2 = inlined_call_operand.vmem [shape: s32[2,128], index: 2, kind: output, shape index: {0}]
  %s3 = inlined_call_operand.vmem [shape: f32[1,2,128], index: 3, kind: output, shape index: {1}]
  %4 = xla_tuple %s2, %s3
  %s5 = sld [smem:[#allocation0]]
  $region26: #{lovasz_softmax_pointcloud.2} parent=0
    _
  %s7 = ssub.s32 1, %s5
  %s8 = scalar_select 0, %s7, %s5
  // Predicated region
  $region2: #{lovasz_softmax_pointcloud.2} parent=0 // pred_check
    _
  $region3: #{lovasz_softmax_pointcloud.2} parent=0 // pred_check_branch
    %10 = sbr.rel (0) target = $region5
  $region4: #{lovasz_softmax_pointcloud.2} parent=0 // pred_region
    _
  $region5: #{lovasz_softmax_pointcloud.2} parent=0 // pred_fallthru
    _
  // Predicated region
  $region6: #{lovasz_softmax_pointcloud.2} parent=0 // pred_check
    _
  $region7: #{lovasz_softmax_pointcloud.2} parent=0 // pred_check_branch
    %12 = sbr.rel (0) target = $region9
  $region8: #{lovasz_softmax_pointcloud.2} parent=0 // pred_region
    _
  $region9: #{lovasz_softmax_pointcloud.2} parent=0 // pred_fallthru
    _
  %v13 = vld [vmem:[%s0 + $0x2] sm:$0x1]
  %v14 = vld [vmem:[%s0 + $0x6] sm:$0x1]
  %v15 = vld [vmem:[%s1] sm:$0x3]
  %v16 = vlaneseq
  %v17 = vand.u32 %v16, 127
  %s18 = smul.u32 0, 128
  %v19 = vstv %s18
  %v20 = vadd.s32 %v19, %v17
  %vm21 = vcmp.lt.s32.totalorder %v20, 128
  %vm22 = vcmp.ne.s32.totalorder %v15, 0
  %vm23 = vmand %vm22, %vm21
  %vm24 = vcmp.eq.s32.totalorder %v15, 2
  %vm25 = vmand %vm24, %vm21
  %v26 = vsel %vm25, 1, 0
  %v27 = vcvt.s32.f32 %v26
  %v30 = vrot.slane %v14, 7
  %vm31 = vcmask 1041409
  %v32 = vsel %vm31, %v30, %v13
  %v34 = vsub.f32 %v27, %v32
  %v35 = vand.u32 2147483647, %v34
  %v37 = vshll.u32 %v35, 1
  %v38 = vor.u32 %v37, %v26
  %v39 = vsub.s32 0, %v38
  %v40 = vsel %vm23, %v39, 1073741824
  %41 = vst [vmem:[%s2] sm:$0x3] %v40
  %vm42 = vcmask 1041408
  %v43 = vsel %vm42, %v27, 0.0
  %44 = vadd.xlane.f32.xlu0 %v43
  %v45 = vpop.xlane.xlu0 %44
  %v46 = vrot.slane %v45, 4
  %v47 = vadd.f32 %v45, %v46
  %v48 = vrot.slane %v47, 2
  %v49 = vadd.f32 %v47, %v48
  %v50 = vrot.slane %v49, 1
  %v51 = vadd.f32 %v49, %v50
  %s52 = vtos %v51
  %v53 = vsel %vm23, 1, 0
  %v54 = vcvt.s32.f32 %v53
  %v55 = vsel %vm42, %v54, 0.0
  %56 = vadd.xlane.f32.xlu0 %v55
  %v57 = vpop.xlane.xlu0 %56
  %v58 = vrot.slane %v57, 4
  %v59 = vadd.f32 %v57, %v58
  %v60 = vrot.slane %v59, 2
  %v61 = vadd.f32 %v59, %v60
  %v62 = vrot.slane %v61, 1
  %v63 = vadd.f32 %v61, %v62
  %s64 = vtos %v63
  %v65 = vlaneseq
  %v66 = vshrl.u32 %v65, 7
  %vm67 = vcmp.eq.s32.totalorder %v66, 0
  %v68 = vstv %s52
  %v69 = vstv %s64
  %v70 = vsel %vm67, %v68, %v69
  %71 = vst [vmem:[%s3] sm:$0x3] %v70
  // Predicated region
  $region10: #{lovasz_softmax_pointcloud.2} parent=0 // pred_check
    _
  $region11: #{lovasz_softmax_pointcloud.2} parent=0 // pred_check_branch
    %73 = sbr.rel (0) target = $region13
  $region12: #{lovasz_softmax_pointcloud.2} parent=0 // pred_region
    _
  $region13: #{lovasz_softmax_pointcloud.2} parent=0 // pred_fallthru
    _
  // Predicated region
  $region14: #{lovasz_softmax_pointcloud.2} parent=0 // pred_check
    _
  $region15: #{lovasz_softmax_pointcloud.2} parent=0 // pred_check_branch
    %75 = sbr.rel (0) target = $region17
  $region16: #{lovasz_softmax_pointcloud.2} parent=0 // pred_region
    _
  $region17: #{lovasz_softmax_pointcloud.2} parent=0 // pred_fallthru
    _
  // Predicated region
  $region18: #{lovasz_softmax_pointcloud.2} parent=0 // pred_check
    _
  $region19: #{lovasz_softmax_pointcloud.2} parent=0 // pred_check_branch
    %77 = sbr.rel (0) target = $region21
  $region20: #{lovasz_softmax_pointcloud.2} parent=0 // pred_region
    _
  $region21: #{lovasz_softmax_pointcloud.2} parent=0 // pred_fallthru
    _
  // Predicated region
  $region22: #{lovasz_softmax_pointcloud.2} parent=0 // pred_check
    _
  $region23: #{lovasz_softmax_pointcloud.2} parent=0 // pred_check_branch
    %79 = sbr.rel (0) target = $region25
  $region24: #{lovasz_softmax_pointcloud.2} parent=0 // pred_region
    _
  $region25: #{lovasz_softmax_pointcloud.2} parent=0 // pred_fallthru
    _

// kernel: lovasz_softmax_pointcloud.3
$region0: #{lovasz_softmax_pointcloud.3}
  #allocation0 [shape = 'u32[]', space=smem, size = 0x4, offset = 0x4, fixed_abs, tag = 'smem constant byte address 0x4 - core index']
  #allocation1 [shape = 'u32[144,128]{1,0:T(1,128)}', space=vmem, size = 0x12000, scoped, tag = 'internal scratch']
  #allocation2 [shape = 'f32[1,1]{1,0:T(1,128)}', space=vmem, size = 0x200, scoped, tag = 'scratch operand']
  %s0 = inlined_call_operand.vmem [shape: f32[1,2], index: 0, kind: input, shape index: {}]
  %s1 = inlined_call_operand.vmem [shape: bf16[256,256], index: 1, kind: input, shape index: {}]
  %s2 = inlined_call_operand.vmem [shape: s32[8,256], index: 2, kind: input, shape index: {}]
  %s3 = inlined_call_operand.hbm [shape: f32[1,1], index: 3, kind: output, shape index: {}]
  %s4 = sld [smem:[#allocation0]]
  $region26: #{lovasz_softmax_pointcloud.3} parent=0
    _
  %s6 = ssub.s32 1, %s4
  %s7 = scalar_select 0, %s6, %s4
  $region1: #{lovasz_softmax_pointcloud.3} parent=0
    #allocation3 [shape = 'u8[512]{0}', space=vmem, size = 0x400, scoped, tag = 'output window, operand 0, single buffered']
    #allocation4 [shape = 's32[1]{0}', space=sflag, size = 0x4, scoped, tag = 'scoped memory for lovasz_softmax_pointcloud.3']
    %8 = vsyncpa [#allocation4], 0
    // Predicated region
    $region2: #{lovasz_softmax_pointcloud.3} parent=1 // pred_check
      _
    $region3: #{lovasz_softmax_pointcloud.3} parent=1 // pred_check_branch
      %10 = sbr.rel (0) target = $region5
    $region4: #{lovasz_softmax_pointcloud.3} parent=1 // pred_region
      _
    $region5: #{lovasz_softmax_pointcloud.3} parent=1 // pred_fallthru
      _
    // Predicated region
    $region6: #{lovasz_softmax_pointcloud.3} parent=1 // pred_check
      _
    $region7: #{lovasz_softmax_pointcloud.3} parent=1 // pred_check_branch
      %12 = sbr.rel (0) target = $region9
    $region8: #{lovasz_softmax_pointcloud.3} parent=1 // pred_region
      _
    $region9: #{lovasz_softmax_pointcloud.3} parent=1 // pred_fallthru
      _
    // Predicated region
    $region10: #{lovasz_softmax_pointcloud.3} parent=1 // pred_check
      _
    $region11: #{lovasz_softmax_pointcloud.3} parent=1 // pred_check_branch
      %14 = sbr.rel (0) target = $region13
    $region12: #{lovasz_softmax_pointcloud.3} parent=1 // pred_region
      _
    $region13: #{lovasz_softmax_pointcloud.3} parent=1 // pred_fallthru
      _
    %p16 = scmp.eq.s32.totalorder 0, 0
    // Predicated region
    $region14: #{lovasz_softmax_pointcloud.3} parent=1 // pred_check
      %p17 = pneg %p16
    $region15: #{lovasz_softmax_pointcloud.3} parent=1 // pred_check_branch
      %19 = sbr.rel (%p17) target = $region17
    $region16: #{lovasz_softmax_pointcloud.3} parent=1 // pred_region
      %vm20 = vcmask 0
      %21 = vst.msk [vmem:[#allocation3] sm:$0x1] %vm20, 0.0
      %22 = vst.msk [vmem:[#allocation2] sm:$0x1] %vm20, 0.0
    $region17: #{lovasz_softmax_pointcloud.3} parent=1 // pred_fallthru
      _
    %v23 = vld [vmem:[%s0] sm:$0x1]
    %v24 = vld [vmem:[%s2] sm:$0xff]
    %v25 = vld [vmem:[%s2 + $0x8] sm:$0xff]
    %vm26 = vcmp.lt.s32.totalorder %v24, 1
    %vm27 = vcmp.lt.s32.totalorder %v25, 1
    %v28 = vsel %vm26, 1, 0
    %v29 = vsel %vm27, 1, 0
    %v30 = vcvt.s32.f32 %v28
    %v31 = vcvt.s32.f32 %v29
    %v32 = vsub.s32 0, %v24
    %v33 = vsub.s32 0, %v25
    %v34 = vsel %vm26, %v32, 0
    %v35 = vsel %vm27, %v33, 0
    %v36 = vand.u32 %v34, 1
    %v37 = vand.u32 %v35, 1
    %v38 = vcvt.s32.f32 %v36
    %v39 = vcvt.s32.f32 %v37
    %v40 = vshra.s32 %v34, 1
    %v41 = vshra.s32 %v35, 1
    %v44 = vsub.f32 %v30, %v38
    %v45 = vsub.f32 %v31, %v39
    %v46 = vld [vmem:[%s1] sm:$0xff]
    %v47 = vld [vmem:[%s1 + $0x8] sm:$0xff]
    %v48 = vld [vmem:[%s1 + $0x10] sm:$0xff]
    %v49 = vld [vmem:[%s1 + $0x18] sm:$0xff]
    %v50 = vld [vmem:[%s1 + $0x20] sm:$0xff]
    %v51 = vld [vmem:[%s1 + $0x28] sm:$0xff]
    %v52 = vld [vmem:[%s1 + $0x30] sm:$0xff]
    %v53 = vld [vmem:[%s1 + $0x38] sm:$0xff]
    %v54 = vld [vmem:[%s1 + $0x40] sm:$0xff]
    %v55 = vld [vmem:[%s1 + $0x48] sm:$0xff]
    %v56 = vld [vmem:[%s1 + $0x50] sm:$0xff]
    %v57 = vld [vmem:[%s1 + $0x58] sm:$0xff]
    %v58 = vld [vmem:[%s1 + $0x60] sm:$0xff]
    %v59 = vld [vmem:[%s1 + $0x68] sm:$0xff]
    %v60 = vld [vmem:[%s1 + $0x70] sm:$0xff]
    %v61 = vld [vmem:[%s1 + $0x78] sm:$0xff]
    %v62 = vld [vmem:[%s1 + $0x80] sm:$0xff]
    %v63 = vld [vmem:[%s1 + $0x88] sm:$0xff]
    %v64 = vld [vmem:[%s1 + $0x90] sm:$0xff]
    %v65 = vld [vmem:[%s1 + $0x98] sm:$0xff]
    %v66 = vld [vmem:[%s1 + $0xa0] sm:$0xff]
    %v67 = vld [vmem:[%s1 + $0xa8] sm:$0xff]
    %v68 = vld [vmem:[%s1 + $0xb0] sm:$0xff]
    %v69 = vld [vmem:[%s1 + $0xb8] sm:$0xff]
    %v70 = vld [vmem:[%s1 + $0xc0] sm:$0xff]
    %v71 = vld [vmem:[%s1 + $0xc8] sm:$0xff]
    %v72 = vld [vmem:[%s1 + $0xd0] sm:$0xff]
    %v73 = vld [vmem:[%s1 + $0xd8] sm:$0xff]
    %v74 = vld [vmem:[%s1 + $0xe0] sm:$0xff]
    %v75 = vld [vmem:[%s1 + $0xe8] sm:$0xff]
    %v76 = vld [vmem:[%s1 + $0xf0] sm:$0xff]
    %v77 = vld [vmem:[%s1 + $0xf8] sm:$0xff]
    %v78 = vpack.c.bf16 %v38, %v38
    %v79 = vpack.c.bf16 %v39, %v39
    %v112 = vunpack.c.l.b16 %v46
    %v113 = vunpack.c.h.b16 %v46
    %v114 = vunpack.c.l.b16 %v47
    %v115 = vunpack.c.h.b16 %v47
    %v116 = vunpack.c.l.b16 %v48
    %v117 = vunpack.c.h.b16 %v48
    %v118 = vunpack.c.l.b16 %v49
    %v119 = vunpack.c.h.b16 %v49
    %v120 = vunpack.c.l.b16 %v50
    %v121 = vunpack.c.h.b16 %v50
    %v122 = vunpack.c.l.b16 %v51
    %v123 = vunpack.c.h.b16 %v51
    %v124 = vunpack.c.l.b16 %v52
    %v125 = vunpack.c.h.b16 %v52
    %v126 = vunpack.c.l.b16 %v53
    %v127 = vunpack.c.h.b16 %v53
    %v128 = vunpack.c.l.b16 %v54
    %v129 = vunpack.c.h.b16 %v54
    %v130 = vunpack.c.l.b16 %v55
    %v131 = vunpack.c.h.b16 %v55
    %v132 = vunpack.c.l.b16 %v56
    %v133 = vunpack.c.h.b16 %v56
    %v134 = vunpack.c.l.b16 %v57
    %v135 = vunpack.c.h.b16 %v57
    %v136 = vunpack.c.l.b16 %v58
    %v137 = vunpack.c.h.b16 %v58
    %v138 = vunpack.c.l.b16 %v59
    %v139 = vunpack.c.h.b16 %v59
    %v140 = vunpack.c.l.b16 %v60
    %v141 = vunpack.c.h.b16 %v60
    %v142 = vunpack.c.l.b16 %v61
    %v143 = vunpack.c.h.b16 %v61
    %v144 = vunpack.c.l.b16 %v62
    %v145 = vunpack.c.h.b16 %v62
    %v146 = vunpack.c.l.b16 %v63
    %v147 = vunpack.c.h.b16 %v63
    %v148 = vunpack.c.l.b16 %v64
    %v149 = vunpack.c.h.b16 %v64
    %v150 = vunpack.c.l.b16 %v65
    %v151 = vunpack.c.h.b16 %v65
    %v152 = vunpack.c.l.b16 %v66
    %v153 = vunpack.c.h.b16 %v66
    %v154 = vunpack.c.l.b16 %v67
    %v155 = vunpack.c.h.b16 %v67
    %v156 = vunpack.c.l.b16 %v68
    %v157 = vunpack.c.h.b16 %v68
    %v158 = vunpack.c.l.b16 %v69
    %v159 = vunpack.c.h.b16 %v69
    %v160 = vunpack.c.l.b16 %v70
    %v161 = vunpack.c.h.b16 %v70
    %v162 = vunpack.c.l.b16 %v71
    %v163 = vunpack.c.h.b16 %v71
    %v164 = vunpack.c.l.b16 %v72
    %v165 = vunpack.c.h.b16 %v72
    %v166 = vunpack.c.l.b16 %v73
    %v167 = vunpack.c.h.b16 %v73
    %v168 = vunpack.c.l.b16 %v74
    %v169 = vunpack.c.h.b16 %v74
    %v170 = vunpack.c.l.b16 %v75
    %v171 = vunpack.c.h.b16 %v75
    %v172 = vunpack.c.l.b16 %v76
    %v173 = vunpack.c.h.b16 %v76
    %v174 = vunpack.c.l.b16 %v77
    %v175 = vunpack.c.h.b16 %v77
    %v176 = vpack.c.b16 %v114, %v112
    %v177 = vpack.c.b16 %v115, %v113
    %v178 = vpack.c.b16 %v118, %v116
    %v179 = vpack.c.b16 %v119, %v117
    %v180 = vpack.c.b16 %v122, %v120
    %v181 = vpack.c.b16 %v123, %v121
    %v182 = vpack.c.b16 %v126, %v124
    %v183 = vpack.c.b16 %v127, %v125
    %v184 = vpack.c.b16 %v130, %v128
    %v185 = vpack.c.b16 %v131, %v129
    %v186 = vpack.c.b16 %v134, %v132
    %v187 = vpack.c.b16 %v135, %v133
    %v188 = vpack.c.b16 %v138, %v136
    %v189 = vpack.c.b16 %v139, %v137
    %v190 = vpack.c.b16 %v142, %v140
    %v191 = vpack.c.b16 %v143, %v141
    %v192 = vpack.c.b16 %v146, %v144
    %v193 = vpack.c.b16 %v147, %v145
    %v194 = vpack.c.b16 %v150, %v148
    %v195 = vpack.c.b16 %v151, %v149
    %v196 = vpack.c.b16 %v154, %v152
    %v197 = vpack.c.b16 %v155, %v153
    %v198 = vpack.c.b16 %v158, %v156
    %v199 = vpack.c.b16 %v159, %v157
    %v200 = vpack.c.b16 %v162, %v160
    %v201 = vpack.c.b16 %v163, %v161
    %v202 = vpack.c.b16 %v166, %v164
    %v203 = vpack.c.b16 %v167, %v165
    %v204 = vpack.c.b16 %v170, %v168
    %v205 = vpack.c.b16 %v171, %v169
    %v206 = vpack.c.b16 %v174, %v172
    %v207 = vpack.c.b16 %v175, %v173
    %240 = vmatprep.subr.bf16.mxu0 %v177
    %241 = vmatpush1.bf16.msra.mxu0 %v176
    %242 = vmatprep.subr.bf16.mxu0 %v179
    %243 = vmatpush1.bf16.msra.mxu0 %v178
    %244 = vmatprep.subr.bf16.mxu0 %v181
    %245 = vmatpush1.bf16.msra.mxu0 %v180
    %246 = vmatprep.subr.bf16.mxu0 %v183
    %247 = vmatpush1.bf16.msra.mxu0 %v182
    %248 = vmatprep.subr.bf16.mxu0 %v185
    %249 = vmatpush1.bf16.msra.mxu0 %v184
    %250 = vmatprep.subr.bf16.mxu0 %v187
    %251 = vmatpush1.bf16.msra.mxu0 %v186
    %252 = vmatprep.subr.bf16.mxu0 %v189
    %253 = vmatpush1.bf16.msra.mxu0 %v188
    %254 = vmatprep.subr.bf16.mxu0 %v191
    %255 = vmatpush1.bf16.msra.mxu0 %v190
    %256 = vmatprep.subr.bf16.mxu0 %v193
    %257 = vmatpush1.bf16.msra.mxu0 %v192
    %258 = vmatprep.subr.bf16.mxu0 %v195
    %259 = vmatpush1.bf16.msra.mxu0 %v194
    %260 = vmatprep.subr.bf16.mxu0 %v197
    %261 = vmatpush1.bf16.msra.mxu0 %v196
    %262 = vmatprep.subr.bf16.mxu0 %v199
    %263 = vmatpush1.bf16.msra.mxu0 %v198
    %264 = vmatprep.subr.bf16.mxu0 %v201
    %265 = vmatpush1.bf16.msra.mxu0 %v200
    %266 = vmatprep.subr.bf16.mxu0 %v203
    %267 = vmatpush1.bf16.msra.mxu0 %v202
    %268 = vmatprep.subr.bf16.mxu0 %v205
    %269 = vmatpush1.bf16.msra.mxu0 %v204
    %270 = vmatprep.subr.bf16.mxu0 %v207
    %271 = vmatpush1.bf16.msra.mxu0 %v206
    %272 = vmatprep.mubr.bf16.mxu0 %v79
    %273 = vmatmul.mubr.bf16.gmra.mrb[0].mxu0 %v78
    %v274 = vpop.f32.mrb[0].mxu0
    %v275 = vadd.f32 0.0, %v274
    %v276 = vpop.f32.mrb[0].mxu0
    %v277 = vadd.f32 0.0, %v276
    %v278 = vpop.f32.mrb[0].mxu0
    %v279 = vpop.f32.mrb[0].mxu0
    %280 = vdwg.mxu0
    %v281 = vlaneseq
    %v282 = vshrl.u32 %v281, 7
    %v283 = vlaneseq
    %v284 = vand.u32 %v283, 127
    %vm285 = vcmp.lt.s32.totalorder %v284, %v282
    %v286 = vsel %vm285, 1, 0
    %v287 = vcvt.s32.f32 %v286
    %v288 = vpack.c.bf16 %v287, %v287
    %v289 = vpack.c.bf16 %v277, %v277
    %291 = vrot.lane.b32.xlu0 %v289, 1
    %v292 = vpop.permute.xlu0 %291
    %vm293 = vcmask 64512
    %v295 = vsel %vm293, %v288, 0
    %vm297 = vcmask 1043456
    %v299 = vsel %vm297, %v292, 0
    %301 = vmatprep.subr.bf16.mxu0 0
    %302 = vmatpush1.bf16.msra.mxu0 %v299
    %303 = vmatprep.subr.bf16.mxu0 0
    %304 = vmatpush1.bf16.msra.mxu0 0
    %305 = vmatprep.subr.bf16.mxu0 0
    %306 = vmatpush1.bf16.msra.mxu0 0
    %307 = vmatprep.subr.bf16.mxu0 0
    %308 = vmatpush1.bf16.msra.mxu0 0
    %309 = vmatprep.subr.bf16.mxu0 0
    %310 = vmatpush1.bf16.msra.mxu0 0
    %311 = vmatprep.subr.bf16.mxu0 0
    %312 = vmatpush1.bf16.msra.mxu0 0
    %313 = vmatprep.subr.bf16.mxu0 0
    %314 = vmatpush1.bf16.msra.mxu0 0
    %315 = vmatprep.subr.bf16.mxu0 0
    %316 = vmatpush1.bf16.msra.mxu0 0
    %317 = vmatprep.subr.bf16.mxu0 0
    %318 = vmatpush1.bf16.msra.mxu0 0
    %319 = vmatprep.subr.bf16.mxu0 0
    %320 = vmatpush1.bf16.msra.mxu0 0
    %321 = vmatprep.subr.bf16.mxu0 0
    %322 = vmatpush1.bf16.msra.mxu0 0
    %323 = vmatprep.subr.bf16.mxu0 0
    %324 = vmatpush1.bf16.msra.mxu0 0
    %325 = vmatprep.subr.bf16.mxu0 0
    %326 = vmatpush1.bf16.msra.mxu0 0
    %327 = vmatprep.subr.bf16.mxu0 0
    %328 = vmatpush1.bf16.msra.mxu0 0
    %329 = vmatprep.subr.bf16.mxu0 0
    %330 = vmatpush1.bf16.msra.mxu0 0
    %331 = vmatprep.subr.bf16.mxu0 0
    %332 = vmatpush1.bf16.msra.mxu0 0
    %333 = vmatprep.mubr.bf16.mxu0 0
    %334 = vmatmul.mubr.bf16.gmra.mrb[0].mxu0 %v295
    %v335 = vpop.f32.mrb[0].mxu0
    %v336 = vadd.f32 0.0, %v335
    %v337 = vpop.f32.mrb[0].mxu0
    %v338 = vpop.f32.mrb[0].mxu0
    %v339 = vpop.f32.mrb[0].mxu0
    %340 = vdwg.mxu0
    %342 = vset.pattern.permute.xlu0 0
    %343 = vperm.xlu0 %342, %v336
    %v344 = vpop.permute.xlu0 %343
    %v346 = vadd.f32 %v275, %v344
    %v347 = vadd.f32 %v277, %v344
    %v348 = vld [vmem:[#allocation2] sm:$0x1]
    %v350 = vlaneseq
    %v351 = vshrl.u32 %v350, 7
    %v352 = vsub.s32 0, %v351
    %v353 = vrot.slane %v348, %v352
    %354 = vset.pattern.permute.xlu0 0
    %355 = vperm.xlu0 %354, %v353
    %v356 = vpop.permute.xlu0 %355
    %v358 = vadd.f32 %v346, %v356
    %v359 = vadd.f32 %v347, %v356
    %v360 = vadd.s32 %v284, 128
    %s361 = smul.u32 0, 2048
    %v362 = vmul.u32 %v282, 256
    %v363 = vstv %s361
    %v364 = vadd.s32 %v363, %v362
    %v365 = vadd.s32 %v364, %v284
    %v366 = vadd.s32 %v364, %v360
    %v367 = vadd.s32 %v365, 1
    %v368 = vadd.s32 %v366, 1
    %v369 = vcvt.s32.f32 %v367
    %v370 = vcvt.s32.f32 %v368
    %v372 = vlaneseq
    %v373 = vshrl.u32 %v372, 7
    %v374 = vsub.s32 0, %v373
    %v375 = vrot.slane %v23, %v374
    %376 = vset.pattern.permute.xlu0 1
    %377 = vperm.xlu0 %376, %v375
    %v378 = vpop.permute.xlu0 %377
    %v380 = vmin.f32 %v369, %v378
    %v381 = vmin.f32 %v370, %v378
    %v382 = vsub.f32 %v380, %v358
    %v383 = vsub.f32 %v381, %v359
    %384 = vset.pattern.permute.xlu0 0
    %385 = vperm.xlu0 %384, %v375
    %v386 = vpop.permute.xlu0 %385
    %v388 = vsub.f32 %v386, %v358
    %v389 = vsub.f32 %v386, %v359
    %v390 = vadd.f32 %v386, %v382
    %v391 = vadd.f32 %v386, %v383
    %v392 = vadd.f32 %v388, %v38
    %v393 = vadd.f32 %v389, %v39
    %v394 = vsub.f32 %v390, %v44
    %v395 = vsub.f32 %v391, %v45
    %v396 = vmax.f32 %v390, 1.0
    %v397 = vmax.f32 %v391, 1.0
    %v398 = vrcp.pop %v396
    %v399 = vrcp.pop %v397
    %v400 = vmul.f32 %v396, %v398
    %v401 = vmul.f32 %v397, %v399
    %v402 = vsub.f32 2.0, %v400
    %v403 = vsub.f32 2.0, %v401
    %v404 = vmul.f32 %v398, %v402
    %v405 = vmul.f32 %v399, %v403
    %v406 = vmax.f32 %v394, 1.0
    %v407 = vmax.f32 %v395, 1.0
    %v408 = vrcp.pop %v406
    %v409 = vrcp.pop %v407
    %v410 = vmul.f32 %v406, %v408
    %v411 = vmul.f32 %v407, %v409
    %v412 = vsub.f32 2.0, %v410
    %v413 = vsub.f32 2.0, %v411
    %v414 = vmul.f32 %v408, %v412
    %v415 = vmul.f32 %v409, %v413
    %v416 = vmul.f32 %v388, %v404
    %v417 = vmul.f32 %v389, %v405
    %vm418 = vcmp.gt.f32.partialorder %v394, 0.5
    %vm419 = vcmp.gt.f32.partialorder %v395, 0.5
    %v420 = vmul.f32 %v392, %v414
    %v421 = vmul.f32 %v393, %v415
    %v422 = vsel %vm418, %v420, 1.0
    %v423 = vsel %vm419, %v421, 1.0
    %v424 = vsub.f32 %v422, %v416
    %v425 = vsub.f32 %v423, %v417
    %v426 = vmul.f32 %v40, %v424
    %v427 = vmul.f32 %v41, %v425
    %v428 = vsel %vm26, %v426, 0.0
    %v429 = vsel %vm27, %v427, 0.0
    %v430 = vadd.f32 %v428, %v429
    %431 = vadd.xlane.f32.xlu0 %v430
    %v432 = vpop.xlane.xlu0 %431
    %v433 = vld [vmem:[#allocation3] sm:$0x1]
    %v434 = vrot.slane %v432, 4
    %v435 = vadd.f32 %v432, %v434
    %v436 = vrot.slane %v435, 2
    %v437 = vadd.f32 %v435, %v436
    %v438 = vrot.slane %v437, 1
    %v439 = vadd.f32 %v437, %v438
    %v440 = vadd.f32 %v433, %v439
    %vm441 = vcmask 0
    %442 = vst.msk [vmem:[#allocation3] sm:$0x1] %vm441, %v440
    %v443 = vld [vmem:[#allocation2] sm:$0x1]
    %vm444 = vcmask 1048568
    %v445 = vsel %vm444, %v277, 0.0
    %v446 = vrot.slane %v445, 4
    %v447 = vadd.f32 %v445, %v446
    %v448 = vrot.slane %v447, 2
    %v449 = vadd.f32 %v447, %v448
    %v450 = vrot.slane %v449, 1
    %v451 = vadd.f32 %v449, %v450
    %v454 = vunpack.c.l.s4 1966171168
    %v455 = vunpack.c.0.s8 %v454
    %v456 = vlaneseq
    %v457 = vshrl.u32 %v456, 7
    %v458 = vsub.s32 %v455, %v457
    %v459 = vrot.slane %v451, %v458
    %v461 = vunpack.c.l.s4 1966171168
    %v462 = vunpack.c.0.s8 %v461
    %v463 = vlaneseq
    %v464 = vshrl.u32 %v463, 7
    %v465 = vsub.s32 %v462, %v464
    %v466 = vrot.slane %v459, %v465
    %467 = vrot.lane.b32.xlu0 %v466, 1
    %v468 = vpop.permute.xlu0 %467
    %v470 = vadd.f32 %v443, %v468
    %471 = vst.msk [vmem:[#allocation2] sm:$0x1] %vm441, %v470
    // Predicated region
    $region18: #{lovasz_softmax_pointcloud.3} parent=1 // pred_check
      _
    $region19: #{lovasz_softmax_pointcloud.3} parent=1 // pred_check_branch
      %473 = sbr.rel (0) target = $region21
    $region20: #{lovasz_softmax_pointcloud.3} parent=1 // pred_region
      %s475 = ssub.s32 16, 16
      %476 = vsyncadd [#allocation4], %s475
      %s478 = sshll.u32 [#allocation3], 4
      %s479 = int_to_ptr.vmem [resolvable:$true] %s478
      %481 = dma.vmem_to_hbm [thread:$0]  %s479, 16, %s3, [#allocation4]
    $region21: #{lovasz_softmax_pointcloud.3} parent=1 // pred_fallthru
      _
    // Predicated region
    $region22: #{lovasz_softmax_pointcloud.3} parent=1 // pred_check
      _
    $region23: #{lovasz_softmax_pointcloud.3} parent=1 // pred_check_branch
      %483 = sbr.rel (0) target = $region25
    $region24: #{lovasz_softmax_pointcloud.3} parent=1 // pred_region
      %484 = dma.done [#allocation4], 16
    $region25: #{lovasz_softmax_pointcloud.3} parent=1 // pred_fallthru
      _
    %485 = vsyncpa [#allocation4], 1

</llo_original>
